<compile_context>
chip_gen: v6e
topology: v6e:2x2x1
jax: 0.10.0
libtpu: 0.0.40
codegen_flags: <defaults>
</compile_context>

<pallas_src>
import functools

import jax
import jax.numpy as jnp
from jax.experimental import pallas as pl
from jax.experimental.pallas import tpu as pltpu

LN_EPS = 1e-5

_LANE = 128
_SUBLANE = 8
# Per-step tile budget: (in tile + out tile) x 2 double-buffers, f32 footprint.
_VMEM_TILE_BUDGET = 20 * 1024 * 1024
# Safe on every generation: v5e/v6e have 128 MiB physical VMEM, v7x has 64 MiB.
_VMEM_LIMIT_BYTES = 32 * 1024 * 1024


def _round_up(a, b):
    return (a + b - 1) // b * b


def _scaler_ln_kernel(s_ref, x_ref, o_ref, *, n_feat, n_feat_padded, scalar_mode):
    # x_ref: (TM, Fp) row tile; s_ref: scalar in SMEM or (1, Fp) row in VMEM.
    x = x_ref[...].astype(jnp.float32)
    if scalar_mode:
        y = x * s_ref[0].astype(jnp.float32)        # scalar broadcast from SMEM
    else:
        y = x * s_ref[...].astype(jnp.float32)      # (1, Fp) broadcasts over rows

    inv_f = 1.0 / n_feat                            # true feature count
    mean = jnp.sum(y, axis=-1, keepdims=True) * inv_f
    c = y - mean
    if n_feat_padded != n_feat:
        # Padded feature lanes hold zeros in y; keep them out of the variance.
        col = jax.lax.broadcasted_iota(jnp.int32, (1, n_feat_padded), 1)
        c = jnp.where(col < n_feat, c, 0.0)
    var = jnp.sum(c * c, axis=-1, keepdims=True) * inv_f
    o_ref[...] = (c * jax.lax.rsqrt(var + LN_EPS)).astype(o_ref.dtype)


@functools.partial(jax.jit, static_argnames=("scaler_type", "row_tile"))
def scaler_forward(x, scaler, *, scaler_type="scaler", row_tile=512):
    """x: (..., F).  scaler: shape (1,) for 'scaler', (F,) for 'diag'."""
    assert scaler_type in ("scaler", "diag")
    F = x.shape[-1]
    lead = x.shape[:-1]
    x2d = x.reshape(-1, F)
    n_rows = x2d.shape[0]

    # Lane-dense feature layout.
    Fp = _round_up(F, _LANE)
    if Fp != F:
        x2d = jnp.pad(x2d, ((0, 0), (0, Fp - F)))

    # Row tile: as large as the VMEM budget allows, multiple of the sublane (8).
    bytes_per_row = Fp * 4 * 4  # (in + out) tiles, double-buffered, f32 bound
    tm_cap = max(_SUBLANE,
                 (_VMEM_TILE_BUDGET // bytes_per_row) // _SUBLANE * _SUBLANE)
    tm = min(int(row_tile), tm_cap, _round_up(n_rows, _SUBLANE))
    tm = max(_SUBLANE, tm // _SUBLANE * _SUBLANE)
    grid = (pl.cdiv(n_rows, tm),)  # edge block is masked; no row padding copy

    scalar_mode = scaler_type == "scaler"
    if scalar_mode:
        s_arg = scaler.reshape(1)
        s_spec = pl.BlockSpec(memory_space=pltpu.MemorySpace.SMEM)
    else:
        s_arg = scaler.reshape(1, F)
        if Fp != F:
            s_arg = jnp.pad(s_arg, ((0, 0), (0, Fp - F)))
        s_spec = pl.BlockSpec((1, Fp), lambda i: (0, 0))

    kernel = functools.partial(_scaler_ln_kernel, n_feat=F, n_feat_padded=Fp,
                               scalar_mode=scalar_mode)

    out2d = pl.pallas_call(
        kernel,
        out_shape=jax.ShapeDtypeStruct((n_rows, Fp), x.dtype),
        grid_spec=pltpu.PrefetchScalarGridSpec(
            num_scalar_prefetch=0,
            grid=grid,
            in_specs=[s_spec,
                      pl.BlockSpec((tm, Fp), lambda i: (i, 0))],
            out_specs=pl.BlockSpec((tm, Fp), lambda i: (i, 0)),
        ),
        compiler_params=pltpu.CompilerParams(
            dimension_semantics=("parallel",),
            vmem_limit_bytes=_VMEM_LIMIT_BYTES),
    )(s_arg, x2d)

    if Fp != F:
        out2d = out2d[:, :F]
    return out2d.reshape(*lead, F)


def scaler_forward_ref(x, scaler, *, scaler_type="scaler"):
    """Pure-JAX reference matching the PyTorch module."""
    if scaler_type == "scaler":
        y = x * scaler.reshape(())
    else:
        y = jnp.matmul(x, jnp.diag(scaler),
                       precision=jax.lax.Precision.HIGHEST)
    mean = jnp.mean(y, axis=-1, keepdims=True)
    var = jnp.mean((y - mean) ** 2, axis=-1, keepdims=True)
    return (y - mean) / jnp.sqrt(var + LN_EPS)


if __name__ == "__main__":
    key = jax.random.PRNGKey(0)
    kx, ks, kx2 = jax.random.split(key, 3)

    batch, seq, out_features = 2, 8, 32
    x = jax.random.normal(kx, (batch, seq, out_features), dtype=jnp.float32)
    # 14 rows: exercises the masked edge block (rows not a tile multiple).
    x_odd = jax.random.normal(kx2, (batch, 7, out_features), dtype=jnp.float32)

    # Module __init__ uses torch.zeros for the scaler; zeros make the test
    # degenerate, so initialize deterministically with PRNG values instead.
    scaler_diag = jax.random.normal(ks, (out_features,), dtype=jnp.float32)
    scaler_scalar = jnp.array([0.7], dtype=jnp.float32)

    ok = True
    for xin in (x, x_odd):
        for stype, sparam in (("scaler", scaler_scalar), ("diag", scaler_diag)):
            out = jax.block_until_ready(
                scaler_forward(xin, sparam, scaler_type=stype))
            ref = scaler_forward_ref(xin, sparam, scaler_type=stype)
            ok &= bool(jnp.allclose(out, ref, atol=1e-5, rtol=1e-5))

    print("KERNEL_OK" if ok else "KERNEL_MISMATCH")
</pallas_src>

<mosaic_0001>
module attributes {stable_mosaic.version = 11 : i64} {
  func.func @_scaler_ln_kernel(%arg0: i32, %arg1: memref<1xf32, #tpu.memory_space<smem>>, %arg2: memref<16x128xf32, #tpu.memory_space<vmem>>, %arg3: memref<16x128xf32, #tpu.memory_space<vmem>>) attributes {dimension_semantics = [#tpu.dimension_semantics<parallel>], iteration_bounds = array<i64: 1>, scalar_prefetch = 0 : i64, scratch_operands = 0 : i64, tpu.core_type = #tpu.core_type<tc>, window_params = [{transform_indices = @transform_0, window_bounds = array<i64: 1>}, {transform_indices = @transform_1, window_bounds = array<i64: 16, 128>}, {transform_indices = @transform_2, window_bounds = array<i64: 16, 128>}]} {
    %c0 = arith.constant 0 : index
    %c0_0 = arith.constant 0 : index
    %0 = vector.load %arg2[%c0, %c0_0] : memref<16x128xf32, #tpu.memory_space<vmem>>, vector<16x128xf32>
    %c0_1 = arith.constant 0 : index
    %1 = memref.load %arg1[%c0_1] : memref<1xf32, #tpu.memory_space<smem>>
    %2 = vector.broadcast %1 : f32 to vector<16x128xf32>
    %3 = arith.mulf %0, %2 : vector<16x128xf32>
    %cst = arith.constant dense<0.000000e+00> : vector<16xf32>
    %4 = vector.multi_reduction <add>, %3, %cst [1] : vector<16x128xf32> to vector<16xf32>
    %5 = vector.shape_cast %4 : vector<16xf32> to vector<16x1xf32>
    %cst_2 = arith.constant 3.125000e-02 : f32
    %6 = vector.broadcast %cst_2 : f32 to vector<16x1xf32>
    %7 = arith.mulf %5, %6 : vector<16x1xf32>
    %8 = vector.broadcast %7 : vector<16x1xf32> to vector<16x128xf32>
    %9 = arith.subf %3, %8 : vector<16x128xf32>
    %10 = tpu.iota {dimensions = array<i32: 1>} : vector<1x128xi32>
    %c32_i32 = arith.constant 32 : i32
    %11 = vector.broadcast %c32_i32 : i32 to vector<1x128xi32>
    %12 = arith.cmpi slt, %10, %11 : vector<1x128xi32>
    %cst_3 = arith.constant 0.000000e+00 : f32
    %13 = vector.shape_cast %12 : vector<1x128xi1> to vector<1x128xi1>
    %14 = vector.broadcast %13 : vector<1x128xi1> to vector<16x128xi1>
    %15 = vector.broadcast %cst_3 : f32 to vector<16x128xf32>
    %16 = arith.select %14, %9, %15 : vector<16x128xi1>, vector<16x128xf32>
    %17 = arith.mulf %16, %16 : vector<16x128xf32>
    %cst_4 = arith.constant dense<0.000000e+00> : vector<16xf32>
    %18 = vector.multi_reduction <add>, %17, %cst_4 [1] : vector<16x128xf32> to vector<16xf32>
    %19 = vector.shape_cast %18 : vector<16xf32> to vector<16x1xf32>
    %cst_5 = arith.constant 3.125000e-02 : f32
    %20 = vector.broadcast %cst_5 : f32 to vector<16x1xf32>
    %21 = arith.mulf %19, %20 : vector<16x1xf32>
    %cst_6 = arith.constant 9.99999974E-6 : f32
    %22 = vector.broadcast %cst_6 : f32 to vector<16x1xf32>
    %23 = arith.addf %21, %22 : vector<16x1xf32>
    %24 = math.rsqrt %23 : vector<16x1xf32>
    %25 = vector.broadcast %24 : vector<16x1xf32> to vector<16x128xf32>
    %26 = arith.mulf %16, %25 : vector<16x128xf32>
    %c0_7 = arith.constant 0 : index
    %c0_8 = arith.constant 0 : index
    %27 = vector.load %arg3[%c0_7, %c0_8] : memref<16x128xf32, #tpu.memory_space<vmem>>, vector<16x128xf32>
    tpu.vector_store %arg3[%c0_7, %c0_8], %26 {strides = array<i32>} : memref<16x128xf32, #tpu.memory_space<vmem>>, vector<16x128xf32>,
    return
  }
  func.func @transform_0(%arg0: i32) -> i32 {
    %c0_i32 = arith.constant 0 : i32
    %c0_i32_0 = arith.constant 0 : i32
    return %c0_i32 : i32
  }
  func.func @transform_1(%arg0: i32) -> (i32, i32) {
    %c0_i32 = arith.constant 0 : i32
    %c0_i32_0 = arith.constant 0 : i32
    return %arg0, %c0_i32 : i32, i32
  }
  func.func @transform_2(%arg0: i32) -> (i32, i32) {
    %c0_i32 = arith.constant 0 : i32
    %c0_i32_0 = arith.constant 0 : i32
    return %arg0, %c0_i32 : i32, i32
  }
}

</mosaic_0001>

<llo_original>
// kernel: scaler_forward.1
$region0: #{scaler_forward.1}
  #allocation0 [shape = 'u32[]', space=smem, size = 0x4, offset = 0x4, fixed_abs, tag = 'smem constant byte address 0x4 - core index']
  #allocation1 [shape = 'u32[144,128]{1,0:T(1,128)}', space=vmem, size = 0x12000, scoped, tag = 'internal scratch']
  #allocation2 [shape = 'f32[1]{0:T(128)S(6)}', space=smem, size = 0x200, scoped, tag = 'scoped memory for scaler_forward.1']
  %s0 = inlined_call_operand.<no memory space> [shape: f32[1], index: 0, kind: input, shape index: {}]
  %s1 = inlined_call_operand.vmem [shape: f32[16,128], index: 1, kind: input, shape index: {}]
  %s2 = inlined_call_operand.vmem [shape: f32[16,128], index: 2, kind: output, shape index: {}]
  %s3 = sld [smem:[#allocation0]]
  $region18: #{scaler_forward.1} parent=0
    _
  %s5 = ssub.s32 1, %s3
  %s6 = scalar_select 0, %s5, %s3
  %7 = sst [smem:[#allocation2]] %s0
  // Predicated region
  $region2: #{scaler_forward.1} parent=0 // pred_check
    _
  $region3: #{scaler_forward.1} parent=0 // pred_check_branch
    %9 = sbr.rel (0) target = $region5
  $region4: #{scaler_forward.1} parent=0 // pred_region
    _
  $region5: #{scaler_forward.1} parent=0 // pred_fallthru
    _
  // Predicated region
  $region6: #{scaler_forward.1} parent=0 // pred_check
    _
  $region7: #{scaler_forward.1} parent=0 // pred_check_branch
    %11 = sbr.rel (0) target = $region9
  $region8: #{scaler_forward.1} parent=0 // pred_region
    _
  $region9: #{scaler_forward.1} parent=0 // pred_fallthru
    _
  %v12 = vld [vmem:[%s1] sm:$0xff]
  %v13 = vld [vmem:[%s1 + $0x8] sm:$0xff]
  %s14 = sld [smem:[#allocation2]]
  %v15 = vstv %s14
  %v16 = vmul.f32 %v12, %v15
  %v17 = vmul.f32 %v13, %v15
  %18 = vadd.xlane.f32.xlu0 %v16
  %v19 = vpop.xlane.xlu0 %18
  %20 = vadd.xlane.f32.xlu0 %v17
  %v21 = vpop.xlane.xlu0 %20
  %v22 = vmul.f32 %v19, 0.03125
  %v23 = vmul.f32 %v21, 0.03125
  %v24 = vsub.f32 %v16, %v22
  %v25 = vsub.f32 %v17, %v23
  %v26 = vlaneseq
  %v27 = vand.u32 %v26, 127
  %vm28 = vcmp.lt.s32.totalorder %v27, 32
  %v29 = vsel %vm28, 1, 0
  %vm30 = vcmp.eq.s32.totalorder %v29, 1
  %v31 = vsel %vm30, %v24, 0.0
  %v32 = vsel %vm30, %v25, 0.0
  %v33 = vmul.f32 %v31, %v31
  %v34 = vmul.f32 %v32, %v32
  %35 = vadd.xlane.f32.xlu0 %v33
  %v36 = vpop.xlane.xlu0 %35
  %37 = vadd.xlane.f32.xlu0 %v34
  %v38 = vpop.xlane.xlu0 %37
  %v39 = vmul.f32 %v36, 0.03125
  %v40 = vmul.f32 %v38, 0.03125
  %v41 = vadd.f32 %v39, 1e-05
  %v42 = vadd.f32 %v40, 1e-05
  %v43 = vrsqrt.pop %v41
  %v44 = vrsqrt.pop %v42
  %v45 = vmul.f32 %v31, %v43
  %v46 = vmul.f32 %v32, %v44
  %47 = vst [vmem:[%s2] sm:$0xff] %v45
  %48 = vst [vmem:[%s2 + $0x8] sm:$0xff] %v46
  // Predicated region
  $region10: #{scaler_forward.1} parent=0 // pred_check
    _
  $region11: #{scaler_forward.1} parent=0 // pred_check_branch
    %50 = sbr.rel (0) target = $region13
  $region12: #{scaler_forward.1} parent=0 // pred_region
    _
  $region13: #{scaler_forward.1} parent=0 // pred_fallthru
    _
  // Predicated region
  $region14: #{scaler_forward.1} parent=0 // pred_check
    _
  $region15: #{scaler_forward.1} parent=0 // pred_check_branch
    %52 = sbr.rel (0) target = $region17
  $region16: #{scaler_forward.1} parent=0 // pred_region
    _
  $region17: #{scaler_forward.1} parent=0 // pred_fallthru
    _

</llo_original>
